<compile_context>
chip_gen: v7x
topology: tpu7x:2x2x1
jax: 0.10.0
libtpu: 0.0.40
codegen_flags: <defaults>
</compile_context>

<pallas_src>
import functools

import jax
import jax.numpy as jnp
from jax.experimental import pallas as pl
from jax.experimental.pallas import tpu as pltpu


def _round_up(x, m):
    return ((x + m - 1) // m) * m


def _cdiv(a, b):
    return -(-a // b)


def _choose_tiling(B, tb_max):
    """Pick (TB, B_pad). For B > 128, use an even number (>=2) of balanced steps so
    the 'parallel' batch axis actually shards across both v7x TensorCores and
    padded dead rows are minimized. VMEM stays <10 MiB even at TB=1024."""
    tb_max = _round_up(max(tb_max, 8), 8)
    if B <= 128:                                  # tiny batch: single tile
        TB = _round_up(max(B, 8), 8)
        return TB, TB
    n = max(2, _cdiv(B, tb_max))
    if n % 2:
        n += 1
    TB = _round_up(_cdiv(B, n), 8)
    return TB, n * TB


def _ppo_ac_kernel(state_ref, action_ref,
                   w1_ref, b1_ref, w2_ref, b2_ref,
                   wa3_ref, ba3_ref, wc3_ref,
                   inv_var_ref, consts_ref,
                   out_ref, *, H_pad, A):
    cdt = w1_ref.dtype                    # MXU compute dtype (f32 or bf16)
    f32 = jnp.float32
    x = state_ref[...].astype(cdt)        # (TB, D_in)

    # ---- fused layer 1: [actor | critic] in one 2*H_pad-wide dot ----
    z1 = jnp.dot(x, w1_ref[...], preferred_element_type=f32) + b1_ref[...]
    lane2h = jax.lax.broadcasted_iota(jnp.int32, z1.shape, 1)
    h1 = jnp.where(lane2h < H_pad, jnp.tanh(z1), jnp.maximum(z1, 0.0))

    # ---- fused layer 2: block-diagonal [[wa2, 0], [0, wc2]] ----
    z2 = jnp.dot(h1.astype(cdt), w2_ref[...], preferred_element_type=f32) + b2_ref[...]
    h2 = jnp.where(lane2h < H_pad, jnp.tanh(z2), jnp.maximum(z2, 0.0))

    ha = h2[:, :H_pad]                    # actor hidden (128-aligned slice)
    hc = h2[:, H_pad:]                    # critic hidden

    # ---- actor head: mean occupies lanes [0, A) of a 128-lane register ----
    mean = jnp.tanh(jnp.dot(ha.astype(cdt), wa3_ref[...],
                            preferred_element_type=f32) + ba3_ref[...])   # (TB, 128)

    # ---- critic head (output width 1): VPU multiply + lane reduction ----
    value = jnp.sum(hc * wc3_ref[...], axis=-1, keepdims=True)   # bias folded in consts

    # ---- diagonal-Gaussian log_prob; full-f32 path (never touches the MXU) ----
    diff = action_ref[...].astype(f32) - mean[:, :A]             # (TB, A)
    quad = jnp.sum(diff * diff * inv_var_ref[...], axis=-1, keepdims=True)

    # ---- single lane-dense output slab ----
    lane = jax.lax.broadcasted_iota(jnp.int32, mean.shape, 1)
    slab = (mean
            + jnp.where(lane == A, value, 0.0)
            + jnp.where(lane == A + 1, -0.5 * quad, 0.0)
            + consts_ref[...])
    out_ref[...] = slab.astype(out_ref.dtype)


def _fallback_forward(state, action, p):
    """Pure-JAX path for tiny (rollout-time) batches; identical math, same params."""
    H, A = p["H_pad"], p["action_dim"]
    x = state.astype(jnp.float32)
    z1 = x @ p["w1"] + p["b1"]
    h1 = jnp.concatenate([jnp.tanh(z1[:, :H]), jnp.maximum(z1[:, H:], 0.0)], axis=-1)
    z2 = h1 @ p["w2"] + p["b2"]
    ha, hc = jnp.tanh(z2[:, :H]), jnp.maximum(z2[:, H:], 0.0)
    mean = jnp.tanh(ha @ p["wa3"] + p["ba3"])[:, :A]
    value = jnp.sum(hc * p["wc3_row"], axis=-1, keepdims=True) + p["consts"][0, A]
    diff = action.astype(jnp.float32) - mean
    quad = jnp.sum(diff * diff * p["inv_var"], axis=-1)
    logp = -0.5 * quad + p["consts"][0, A + 1]
    ent = jnp.full((state.shape[0],), p["consts"][0, A + 2])
    return mean, logp, value, ent


def ppo_actor_critic_evaluate(state, action, p, *, tb=1024,
                              compute_dtype=jnp.float32,
                              small_batch_threshold=64):
    """state: (B, input_dim) f32, action: (B, action_dim) f32.

    Returns (action_mean (B,A), action_logprob (B,), state_value (B,1),
             dist_entropy (B,)) — the deterministic parts of act()/evaluate().
    """
    B, D_in = state.shape
    A = p["action_dim"]
    H_pad = p["H_pad"]

    if B < small_batch_threshold:
        return _fallback_forward(state, action, p)

    TB, B_pad = _choose_tiling(B, tb)
    st = state.astype(jnp.float32)
    ac = action.astype(jnp.float32)
    if B_pad != B:
        st = jnp.pad(st, ((0, B_pad - B), (0, 0)))
        ac = jnp.pad(ac, ((0, B_pad - B), (0, 0)))

    # Weight matrices may go bf16 (MXU bandwidth / VMEM footprint); everything on the
    # log_prob path (action, inv_var, consts, biases) stays f32.
    w1 = p["w1"].astype(compute_dtype)
    w2 = p["w2"].astype(compute_dtype)
    wa3 = p["wa3"].astype(compute_dtype)

    def tile_spec(last):
        return pl.BlockSpec((TB, last), lambda i: (i, 0))

    def resident_spec(arr):
        shp = arr.shape
        return pl.BlockSpec(shp, lambda i: (0,) * len(shp))

    grid = (B_pad // TB,)
    kernel = functools.partial(_ppo_ac_kernel, H_pad=H_pad, A=A)

    # NOTE: total VMEM footprint (tiles + resident weights + intermediates) stays far
    # below the default scoped-VMEM limit on v5e/v6e/v7x for hidden_dim <= 512 and
    # TB <= 1024, so no vmem_limit_bytes override is needed.
    slab = pl.pallas_call(
        kernel,
        out_shape=jax.ShapeDtypeStruct((B_pad, 128), jnp.float32),
        grid_spec=pltpu.PrefetchScalarGridSpec(
            num_scalar_prefetch=0,
            grid=grid,
            in_specs=[
                tile_spec(D_in),            # state
                tile_spec(A),               # action (un-padded last dim)
                resident_spec(w1), resident_spec(p["b1"]),
                resident_spec(w2), resident_spec(p["b2"]),
                resident_spec(wa3), resident_spec(p["ba3"]),
                resident_spec(p["wc3_row"]),
                resident_spec(p["inv_var"]),
                resident_spec(p["consts"]),
            ],
            out_specs=tile_spec(128),
        ),
        compiler_params=pltpu.CompilerParams(
            dimension_semantics=("parallel",)),
    )(st, ac, w1, p["b1"], w2, p["b2"], wa3, p["ba3"],
      p["wc3_row"], p["inv_var"], p["consts"])

    action_mean = slab[:B, :A]
    state_value = slab[:B, A:A + 1]
    action_logprob = slab[:B, A + 1]
    dist_entropy = slab[:B, A + 2]
    return action_mean, action_logprob, state_value, dist_entropy


def init_params(key, input_dim, action_dim, hidden_dim, action_std_init=0.1):
    """PyTorch-Linear-style init; returns (kernel_params, torch_params, action_var)."""
    assert action_dim + 3 <= 128, "slab packs mean/value/logp/entropy into 128 lanes"
    ks = jax.random.split(key, 12)

    def lin(kw, kb, out_dim, in_dim):
        bound = 1.0 / jnp.sqrt(jnp.float32(in_dim))
        w = jax.random.uniform(kw, (out_dim, in_dim), jnp.float32, -bound, bound)
        b = jax.random.uniform(kb, (out_dim,), jnp.float32, -bound, bound)
        return w, b

    wa1, ba1 = lin(ks[0], ks[1], hidden_dim, input_dim)
    wa2, ba2 = lin(ks[2], ks[3], hidden_dim, hidden_dim)
    wa3, ba3 = lin(ks[4], ks[5], action_dim, hidden_dim)
    wc1, bc1 = lin(ks[6], ks[7], hidden_dim, input_dim)
    wc2, bc2 = lin(ks[8], ks[9], hidden_dim, hidden_dim)
    wc3, bc3 = lin(ks[10], ks[11], 1, hidden_dim)
    action_var = jnp.full((action_dim,), action_std_init * action_std_init,
                          jnp.float32)
    torch_params = (wa1, ba1, wa2, ba2, wa3, ba3, wc1, bc1, wc2, bc2, wc3, bc3)

    H_pad = _round_up(hidden_dim, 128)

    def pad2(x, r, c):
        return jnp.pad(x, ((0, r - x.shape[0]), (0, c - x.shape[1])))

    # Layer 1: actor|critic columns side by side -> one (D_in, 2*H_pad) dot.
    w1 = jnp.concatenate([pad2(wa1.T, input_dim, H_pad),
                          pad2(wc1.T, input_dim, H_pad)], axis=1)
    b1 = jnp.concatenate([pad2(ba1.reshape(1, -1), 1, H_pad),
                          pad2(bc1.reshape(1, -1), 1, H_pad)], axis=1)
    # Layer 2: block-diagonal [[wa2, 0], [0, wc2]] -> one (2*H_pad, 2*H_pad) dot.
    w2 = jnp.zeros((2 * H_pad, 2 * H_pad), jnp.float32)
    w2 = w2.at[:H_pad, :H_pad].set(pad2(wa2.T, H_pad, H_pad))
    w2 = w2.at[H_pad:, H_pad:].set(pad2(wc2.T, H_pad, H_pad))
    b2 = jnp.concatenate([pad2(ba2.reshape(1, -1), 1, H_pad),
                          pad2(bc2.reshape(1, -1), 1, H_pad)], axis=1)

    # Actor head: mean at lanes [0, A); padded wa3/ba3 lanes are EXACTLY zero so
    # lanes A..A+2 of the output slab only receive value / log_prob / entropy terms.
    wa3_k = pad2(wa3.T, H_pad, 128)
    ba3_k = pad2(ba3.reshape(1, -1), 1, 128)

    log2pi = jnp.log(jnp.float32(2.0 * jnp.pi))
    logdet = jnp.sum(jnp.log(action_var))
    c_logp = -0.5 * (action_dim * log2pi + logdet)
    entropy_const = 0.5 * action_dim * (1.0 + log2pi) + 0.5 * logdet
    consts = jnp.zeros((1, 128), jnp.float32)
    consts = consts.at[0, action_dim].set(bc3[0])              # critic output bias
    consts = consts.at[0, action_dim + 1].set(c_logp)          # log_prob constant
    consts = consts.at[0, action_dim + 2].set(entropy_const)   # entropy (per-row const)

    kp = dict(
        w1=w1, b1=b1, w2=w2, b2=b2,
        wa3=wa3_k, ba3=ba3_k,
        wc3_row=pad2(wc3, 1, H_pad),
        inv_var=(1.0 / action_var).reshape(1, -1),
        consts=consts,
        action_dim=action_dim, H_pad=H_pad,
    )
    return kp, torch_params, action_var


def reference_evaluate(state, action, torch_params, action_var):
    """Pure-JAX replica of PPOActorCritic.evaluate (+ action_mean) for verification."""
    (wa1, ba1, wa2, ba2, wa3, ba3, wc1, bc1, wc2, bc2, wc3, bc3) = torch_params
    h = jnp.tanh(state @ wa1.T + ba1)
    h = jnp.tanh(h @ wa2.T + ba2)
    mean = jnp.tanh(h @ wa3.T + ba3)

    v = jnp.maximum(state @ wc1.T + bc1, 0.0)
    v = jnp.maximum(v @ wc2.T + bc2, 0.0)
    value = v @ wc3.T + bc3

    k = action_var.shape[0]
    log2pi = jnp.log(jnp.float32(2.0 * jnp.pi))
    diff = action - mean
    quad = jnp.sum(diff * diff / action_var, axis=-1)
    logdet = jnp.sum(jnp.log(action_var))
    logp = -0.5 * (quad + logdet + k * log2pi)
    entropy = jnp.full((state.shape[0],),
                       0.5 * k * (1.0 + log2pi) + 0.5 * logdet)
    return mean, logp, value, entropy


if __name__ == "__main__":
    input_dim, action_dim, hidden_dim = 16, 8, 32
    key = jax.random.PRNGKey(0)
    k_s, k_a, k_p, k_s2, k_a2 = jax.random.split(key, 5)

    kp, tp, action_var = init_params(k_p, input_dim, action_dim, hidden_dim, 0.1)

    # --- small batch, forced through the Pallas kernel (single tile) ---
    B = 8
    state = jax.random.normal(k_s, (B, input_dim), jnp.float32)
    action = 0.1 * jax.random.normal(k_a, (B, action_dim), jnp.float32)

    mean, logp, value, ent = ppo_actor_critic_evaluate(
        state, action, kp, small_batch_threshold=0)
    jax.block_until_ready((mean, logp, value, ent))

    mean_r, logp_r, value_r, ent_r = reference_evaluate(state, action, tp, action_var)
    assert mean.shape == (B, action_dim) and value.shape == (B, 1)
    assert jnp.allclose(mean, mean_r, atol=1e-4, rtol=1e-4)
    assert jnp.allclose(value, value_r, atol=1e-4, rtol=1e-4)
    assert jnp.allclose(logp, logp_r, atol=2e-3, rtol=1e-3)
    assert jnp.allclose(ent, ent_r, atol=1e-4, rtol=1e-4)

    # --- same small batch via the default pure-JAX small-batch fallback ---
    mean_f, logp_f, value_f, ent_f = ppo_actor_critic_evaluate(state, action, kp)
    jax.block_until_ready((mean_f, logp_f, value_f, ent_f))
    assert jnp.allclose(mean_f, mean_r, atol=1e-4, rtol=1e-4)
    assert jnp.allclose(value_f, value_r, atol=1e-4, rtol=1e-4)
    assert jnp.allclose(logp_f, logp_r, atol=2e-3, rtol=1e-3)
    assert jnp.allclose(ent_f, ent_r, atol=1e-4, rtol=1e-4)

    # --- larger, non-multiple batch: two balanced 136-row tiles (dual-TC on v7x) ---
    B2 = 260
    state2 = jax.random.normal(k_s2, (B2, input_dim), jnp.float32)
    action2 = 0.1 * jax.random.normal(k_a2, (B2, action_dim), jnp.float32)
    mean2, logp2, value2, ent2 = ppo_actor_critic_evaluate(state2, action2, kp)
    jax.block_until_ready((mean2, logp2, value2, ent2))
    mean2_r, logp2_r, value2_r, ent2_r = reference_evaluate(state2, action2, tp,
                                                            action_var)
    assert jnp.allclose(mean2, mean2_r, atol=1e-4, rtol=1e-4)
    assert jnp.allclose(value2, value2_r, atol=1e-4, rtol=1e-4)
    assert jnp.allclose(logp2, logp2_r, atol=2e-3, rtol=1e-3)
    assert jnp.allclose(ent2, ent2_r, atol=1e-4, rtol=1e-4)

    # --- bf16 weight/compute-dtype smoke test (log_prob path stays f32) ---
    mean_bf, logp_bf, value_bf, ent_bf = ppo_actor_critic_evaluate(
        state2, action2, kp, compute_dtype=jnp.bfloat16)
    jax.block_until_ready((mean_bf, logp_bf, value_bf, ent_bf))
    assert bool(jnp.all(jnp.isfinite(mean_bf)))
    assert bool(jnp.all(jnp.isfinite(value_bf)))
    assert bool(jnp.all(jnp.isfinite(logp_bf)))
    assert bool(jnp.all(jnp.isfinite(ent_bf)))

    print("KERNEL_OK")
</pallas_src>

<mosaic_0001>
module attributes {stable_mosaic.version = 11 : i64} {
  func.func @_ppo_ac_kernel(%arg0: i32, %arg1: memref<8x16xf32, #tpu.memory_space<vmem>>, %arg2: memref<8x8xf32, #tpu.memory_space<vmem>>, %arg3: memref<16x256xf32, #tpu.memory_space<vmem>>, %arg4: memref<1x256xf32, #tpu.memory_space<vmem>>, %arg5: memref<256x256xf32, #tpu.memory_space<vmem>>, %arg6: memref<1x256xf32, #tpu.memory_space<vmem>>, %arg7: memref<128x128xf32, #tpu.memory_space<vmem>>, %arg8: memref<1x128xf32, #tpu.memory_space<vmem>>, %arg9: memref<1x128xf32, #tpu.memory_space<vmem>>, %arg10: memref<1x8xf32, #tpu.memory_space<vmem>>, %arg11: memref<1x128xf32, #tpu.memory_space<vmem>>, %arg12: memref<8x128xf32, #tpu.memory_space<vmem>>) attributes {dimension_semantics = [#tpu.dimension_semantics<parallel>], iteration_bounds = array<i64: 1>, scalar_prefetch = 0 : i64, scratch_operands = 0 : i64, tpu.core_type = #tpu.core_type<tc>, window_params = [{transform_indices = @transform_0, window_bounds = array<i64: 8, 16>}, {transform_indices = @transform_1, window_bounds = array<i64: 8, 8>}, {pipeline_mode = #tpu.pipeline_mode<synchronous>, transform_indices = @transform_2, window_bounds = array<i64: 16, 256>}, {pipeline_mode = #tpu.pipeline_mode<synchronous>, transform_indices = @transform_3, window_bounds = array<i64: 1, 256>}, {pipeline_mode = #tpu.pipeline_mode<synchronous>, transform_indices = @transform_4, window_bounds = array<i64: 256, 256>}, {pipeline_mode = #tpu.pipeline_mode<synchronous>, transform_indices = @transform_5, window_bounds = array<i64: 1, 256>}, {pipeline_mode = #tpu.pipeline_mode<synchronous>, transform_indices = @transform_6, window_bounds = array<i64: 128, 128>}, {pipeline_mode = #tpu.pipeline_mode<synchronous>, transform_indices = @transform_7, window_bounds = array<i64: 1, 128>}, {pipeline_mode = #tpu.pipeline_mode<synchronous>, transform_indices = @transform_8, window_bounds = array<i64: 1, 128>}, {pipeline_mode = #tpu.pipeline_mode<synchronous>, transform_indices = @transform_9, window_bounds = array<i64: 1, 8>}, {pipeline_mode = #tpu.pipeline_mode<synchronous>, transform_indices = @transform_10, window_bounds = array<i64: 1, 128>}, {transform_indices = @transform_11, window_bounds = array<i64: 8, 128>}]} {
    %c0 = arith.constant 0 : index
    %c0_0 = arith.constant 0 : index
    %0 = vector.load %arg1[%c0, %c0_0] : memref<8x16xf32, #tpu.memory_space<vmem>>, vector<8x16xf32>
    %c0_1 = arith.constant 0 : index
    %c0_2 = arith.constant 0 : index
    %1 = vector.load %arg3[%c0_1, %c0_2] : memref<16x256xf32, #tpu.memory_space<vmem>>, vector<16x256xf32>
    %cst = arith.constant dense<0.000000e+00> : vector<8x256xf32>
    %2 = tpu.matmul %0, %1, %cst {dimension_numbers = #tpu.dot_dimension_numbers<[1], [0], [0], [1], [0, 0, 1, 1], [], []>} : vector<8x16xf32>, vector<16x256xf32>, vector<8x256xf32> -> vector<8x256xf32>
    %c0_3 = arith.constant 0 : index
    %c0_4 = arith.constant 0 : index
    %3 = vector.load %arg4[%c0_3, %c0_4] : memref<1x256xf32, #tpu.memory_space<vmem>>, vector<1x256xf32>
    %4 = vector.broadcast %3 : vector<1x256xf32> to vector<8x256xf32>
    %5 = arith.addf %2, %4 : vector<8x256xf32>
    %6 = tpu.iota {dimensions = array<i32: 1>} : vector<8x256xi32>
    %c128_i32 = arith.constant 128 : i32
    %7 = vector.broadcast %c128_i32 : i32 to vector<8x256xi32>
    %8 = arith.cmpi slt, %6, %7 : vector<8x256xi32>
    %9 = math.tanh %5 : vector<8x256xf32>
    %cst_5 = arith.constant 0.000000e+00 : f32
    %10 = vector.broadcast %cst_5 : f32 to vector<8x256xf32>
    %11 = arith.maximumf %5, %10 : vector<8x256xf32>
    %12 = arith.select %8, %9, %11 : vector<8x256xi1>, vector<8x256xf32>
    %c0_6 = arith.constant 0 : index
    %c0_7 = arith.constant 0 : index
    %13 = vector.load %arg5[%c0_6, %c0_7] : memref<256x256xf32, #tpu.memory_space<vmem>>, vector<256x256xf32>
    %cst_8 = arith.constant dense<0.000000e+00> : vector<8x256xf32>
    %14 = tpu.matmul %12, %13, %cst_8 {dimension_numbers = #tpu.dot_dimension_numbers<[1], [0], [0], [1], [0, 0, 1, 1], [], []>} : vector<8x256xf32>, vector<256x256xf32>, vector<8x256xf32> -> vector<8x256xf32>
    %c0_9 = arith.constant 0 : index
    %c0_10 = arith.constant 0 : index
    %15 = vector.load %arg6[%c0_9, %c0_10] : memref<1x256xf32, #tpu.memory_space<vmem>>, vector<1x256xf32>
    %16 = vector.broadcast %15 : vector<1x256xf32> to vector<8x256xf32>
    %17 = arith.addf %14, %16 : vector<8x256xf32>
    %c128_i32_11 = arith.constant 128 : i32
    %18 = vector.broadcast %c128_i32_11 : i32 to vector<8x256xi32>
    %19 = arith.cmpi slt, %6, %18 : vector<8x256xi32>
    %20 = math.tanh %17 : vector<8x256xf32>
    %cst_12 = arith.constant 0.000000e+00 : f32
    %21 = vector.broadcast %cst_12 : f32 to vector<8x256xf32>
    %22 = arith.maximumf %17, %21 : vector<8x256xf32>
    %23 = arith.select %19, %20, %22 : vector<8x256xi1>, vector<8x256xf32>
    %24 = vector.extract_strided_slice %23 {offsets = [0, 0], sizes = [8, 128], strides = [1, 1]} : vector<8x256xf32> to vector<8x128xf32>
    %25 = vector.extract_strided_slice %23 {offsets = [0, 128], sizes = [8, 128], strides = [1, 1]} : vector<8x256xf32> to vector<8x128xf32>
    %c0_13 = arith.constant 0 : index
    %c0_14 = arith.constant 0 : index
    %26 = vector.load %arg7[%c0_13, %c0_14] : memref<128x128xf32, #tpu.memory_space<vmem>>, vector<128x128xf32>
    %cst_15 = arith.constant dense<0.000000e+00> : vector<8x128xf32>
    %27 = tpu.matmul %24, %26, %cst_15 {dimension_numbers = #tpu.dot_dimension_numbers<[1], [0], [0], [1], [0, 0, 1, 1], [], []>} : vector<8x128xf32>, vector<128x128xf32>, vector<8x128xf32> -> vector<8x128xf32>
    %c0_16 = arith.constant 0 : index
    %c0_17 = arith.constant 0 : index
    %28 = vector.load %arg8[%c0_16, %c0_17] : memref<1x128xf32, #tpu.memory_space<vmem>>, vector<1x128xf32>
    %29 = vector.broadcast %28 : vector<1x128xf32> to vector<8x128xf32>
    %30 = arith.addf %27, %29 : vector<8x128xf32>
    %31 = math.tanh %30 : vector<8x128xf32>
    %c0_18 = arith.constant 0 : index
    %c0_19 = arith.constant 0 : index
    %32 = vector.load %arg9[%c0_18, %c0_19] : memref<1x128xf32, #tpu.memory_space<vmem>>, vector<1x128xf32>
    %33 = vector.broadcast %32 : vector<1x128xf32> to vector<8x128xf32>
    %34 = arith.mulf %25, %33 : vector<8x128xf32>
    %cst_20 = arith.constant dense<0.000000e+00> : vector<8xf32>
    %35 = vector.multi_reduction <add>, %34, %cst_20 [1] : vector<8x128xf32> to vector<8xf32>
    %36 = vector.shape_cast %35 : vector<8xf32> to vector<8x1xf32>
    %c0_21 = arith.constant 0 : index
    %c0_22 = arith.constant 0 : index
    %37 = vector.load %arg2[%c0_21, %c0_22] : memref<8x8xf32, #tpu.memory_space<vmem>>, vector<8x8xf32>
    %38 = vector.extract_strided_slice %31 {offsets = [0, 0], sizes = [8, 8], strides = [1, 1]} : vector<8x128xf32> to vector<8x8xf32>
    %39 = arith.subf %37, %38 : vector<8x8xf32>
    %40 = arith.mulf %39, %39 : vector<8x8xf32>
    %c0_23 = arith.constant 0 : index
    %c0_24 = arith.constant 0 : index
    %41 = vector.load %arg10[%c0_23, %c0_24] : memref<1x8xf32, #tpu.memory_space<vmem>>, vector<1x8xf32>
    %42 = vector.broadcast %41 : vector<1x8xf32> to vector<8x8xf32>
    %43 = arith.mulf %40, %42 : vector<8x8xf32>
    %cst_25 = arith.constant dense<0.000000e+00> : vector<8xf32>
    %44 = vector.multi_reduction <add>, %43, %cst_25 [1] : vector<8x8xf32> to vector<8xf32>
    %45 = vector.shape_cast %44 : vector<8xf32> to vector<8x1xf32>
    %46 = tpu.iota {dimensions = array<i32: 1>} : vector<8x128xi32>
    %c8_i32 = arith.constant 8 : i32
    %47 = vector.broadcast %c8_i32 : i32 to vector<8x128xi32>
    %48 = arith.cmpi eq, %46, %47 : vector<8x128xi32>
    %cst_26 = arith.constant 0.000000e+00 : f32
    %49 = vector.shape_cast %36 : vector<8x1xf32> to vector<8x1xf32>
    %50 = vector.broadcast %49 : vector<8x1xf32> to vector<8x128xf32>
    %51 = vector.broadcast %cst_26 : f32 to vector<8x128xf32>
    %52 = arith.select %48, %50, %51 : vector<8x128xi1>, vector<8x128xf32>
    %53 = arith.addf %31, %52 : vector<8x128xf32>
    %c9_i32 = arith.constant 9 : i32
    %54 = vector.broadcast %c9_i32 : i32 to vector<8x128xi32>
    %55 = arith.cmpi eq, %46, %54 : vector<8x128xi32>
    %cst_27 = arith.constant -5.000000e-01 : f32
    %56 = vector.broadcast %cst_27 : f32 to vector<8x1xf32>
    %57 = arith.mulf %56, %45 : vector<8x1xf32>
    %cst_28 = arith.constant 0.000000e+00 : f32
    %58 = vector.shape_cast %57 : vector<8x1xf32> to vector<8x1xf32>
    %59 = vector.broadcast %58 : vector<8x1xf32> to vector<8x128xf32>
    %60 = vector.broadcast %cst_28 : f32 to vector<8x128xf32>
    %61 = arith.select %55, %59, %60 : vector<8x128xi1>, vector<8x128xf32>
    %62 = arith.addf %53, %61 : vector<8x128xf32>
    %c0_29 = arith.constant 0 : index
    %c0_30 = arith.constant 0 : index
    %63 = vector.load %arg11[%c0_29, %c0_30] : memref<1x128xf32, #tpu.memory_space<vmem>>, vector<1x128xf32>
    %64 = vector.broadcast %63 : vector<1x128xf32> to vector<8x128xf32>
    %65 = arith.addf %62, %64 : vector<8x128xf32>
    %c0_31 = arith.constant 0 : index
    %c0_32 = arith.constant 0 : index
    %66 = vector.load %arg12[%c0_31, %c0_32] : memref<8x128xf32, #tpu.memory_space<vmem>>, vector<8x128xf32>
    tpu.vector_store %arg12[%c0_31, %c0_32], %65 {strides = array<i32>} : memref<8x128xf32, #tpu.memory_space<vmem>>, vector<8x128xf32>,
    return
  }
  func.func @transform_0(%arg0: i32) -> (i32, i32) {
    %c0_i32 = arith.constant 0 : i32
    %c0_i32_0 = arith.constant 0 : i32
    return %arg0, %c0_i32 : i32, i32
  }
  func.func @transform_1(%arg0: i32) -> (i32, i32) {
    %c0_i32 = arith.constant 0 : i32
    %c0_i32_0 = arith.constant 0 : i32
    return %arg0, %c0_i32 : i32, i32
  }
  func.func @transform_2(%arg0: i32) -> (i32, i32) {
    %c0_i32 = arith.constant 0 : i32
    %c0_i32_0 = arith.constant 0 : i32
    %c0_i32_1 = arith.constant 0 : i32
    return %c0_i32, %c0_i32_0 : i32, i32
  }
  func.func @transform_3(%arg0: i32) -> (i32, i32) {
    %c0_i32 = arith.constant 0 : i32
    %c0_i32_0 = arith.constant 0 : i32
    %c0_i32_1 = arith.constant 0 : i32
    return %c0_i32, %c0_i32_0 : i32, i32
  }
  func.func @transform_4(%arg0: i32) -> (i32, i32) {
    %c0_i32 = arith.constant 0 : i32
    %c0_i32_0 = arith.constant 0 : i32
    %c0_i32_1 = arith.constant 0 : i32
    return %c0_i32, %c0_i32_0 : i32, i32
  }
  func.func @transform_5(%arg0: i32) -> (i32, i32) {
    %c0_i32 = arith.constant 0 : i32
    %c0_i32_0 = arith.constant 0 : i32
    %c0_i32_1 = arith.constant 0 : i32
    return %c0_i32, %c0_i32_0 : i32, i32
  }
  func.func @transform_6(%arg0: i32) -> (i32, i32) {
    %c0_i32 = arith.constant 0 : i32
    %c0_i32_0 = arith.constant 0 : i32
    %c0_i32_1 = arith.constant 0 : i32
    return %c0_i32, %c0_i32_0 : i32, i32
  }
  func.func @transform_7(%arg0: i32) -> (i32, i32) {
    %c0_i32 = arith.constant 0 : i32
    %c0_i32_0 = arith.constant 0 : i32
    %c0_i32_1 = arith.constant 0 : i32
    return %c0_i32, %c0_i32_0 : i32, i32
  }
  func.func @transform_8(%arg0: i32) -> (i32, i32) {
    %c0_i32 = arith.constant 0 : i32
    %c0_i32_0 = arith.constant 0 : i32
    %c0_i32_1 = arith.constant 0 : i32
    return %c0_i32, %c0_i32_0 : i32, i32
  }
  func.func @transform_9(%arg0: i32) -> (i32, i32) {
    %c0_i32 = arith.constant 0 : i32
    %c0_i32_0 = arith.constant 0 : i32
    %c0_i32_1 = arith.constant 0 : i32
    return %c0_i32, %c0_i32_0 : i32, i32
  }
  func.func @transform_10(%arg0: i32) -> (i32, i32) {
    %c0_i32 = arith.constant 0 : i32
    %c0_i32_0 = arith.constant 0 : i32
    %c0_i32_1 = arith.constant 0 : i32
    return %c0_i32, %c0_i32_0 : i32, i32
  }
  func.func @transform_11(%arg0: i32) -> (i32, i32) {
    %c0_i32 = arith.constant 0 : i32
    %c0_i32_0 = arith.constant 0 : i32
    return %arg0, %c0_i32 : i32, i32
  }
}

</mosaic_0001>

<llo_original>
// kernel: tpu_custom_call.1
$region0: #{tpu_custom_call.1}
  #allocation0 [shape = 'u32[]', space=smem, size = 0x4, offset = 0x4, fixed_abs, tag = 'smem constant byte address 0x4 - core index']
  #allocation1 [shape = 'u32[144,128]{1,0:T(1,128)}', space=vmem, size = 0x12000, scoped, tag = 'internal scratch']
  %s0 = inlined_call_operand.hbm [shape: f32[8,16], index: 0, kind: input, shape index: {}]
  %s1 = inlined_call_operand.hbm [shape: f32[8,8], index: 1, kind: input, shape index: {}]
  %s2 = inlined_call_operand.hbm [shape: f32[16,256], index: 2, kind: input, shape index: {}]
  %s3 = inlined_call_operand.vmem [shape: f32[1,256], index: 3, kind: input, shape index: {}]
  %s4 = inlined_call_operand.hbm [shape: f32[256,256], index: 4, kind: input, shape index: {}]
  %s5 = inlined_call_operand.vmem [shape: f32[1,256], index: 5, kind: input, shape index: {}]
  %s6 = inlined_call_operand.hbm [shape: f32[128,128], index: 6, kind: input, shape index: {}]
  %s7 = inlined_call_operand.vmem [shape: f32[1,128], index: 7, kind: input, shape index: {}]
  %s8 = inlined_call_operand.vmem [shape: f32[1,128], index: 8, kind: input, shape index: {}]
  %s9 = inlined_call_operand.vmem [shape: f32[1,8], index: 9, kind: input, shape index: {}]
  %s10 = inlined_call_operand.vmem [shape: f32[1,128], index: 10, kind: input, shape index: {}]
  %s11 = inlined_call_operand.hbm [shape: f32[8,128], index: 11, kind: output, shape index: {}]
  %s12 = sld [smem:[#allocation0]]
  $region74: #{tpu_custom_call.1} parent=0
    _
  %s14 = ssub.s32 1, %s12
  %s15 = scalar_select 0, %s14, %s12
  $region1: #{tpu_custom_call.1} parent=0
    #allocation2 [shape = 'u8[4096]{0}', space=vmem, size = 0x1000, scoped, tag = 'input window, operand 0, single buffered']
    #allocation3 [shape = 's32[1]{0}', space=sflag, size = 0x4, scoped, tag = 'scoped memory for tpu_custom_call.1']
    #allocation4 [shape = 's32[1]{0}', space=sflag, size = 0x4, scoped, tag = 'scoped memory for tpu_custom_call.1']
    #allocation5 [shape = 'u8[4096]{0}', space=vmem, size = 0x1000, scoped, tag = 'input window, operand 1, single buffered']
    #allocation6 [shape = 's32[1]{0}', space=sflag, size = 0x4, scoped, tag = 'scoped memory for tpu_custom_call.1']
    #allocation7 [shape = 'u8[16384]{0}', space=vmem, size = 0x4000, scoped, tag = 'input window, operand 2, single buffered']
    #allocation8 [shape = 'u8[262144]{0}', space=vmem, size = 0x40000, scoped, tag = 'input window, operand 4, single buffered']
    #allocation9 [shape = 's32[1]{0}', space=sflag, size = 0x4, scoped, tag = 'scoped memory for tpu_custom_call.1']
    #allocation10 [shape = 'u8[65536]{0}', space=vmem, size = 0x10000, scoped, tag = 'input window, operand 6, single buffered']
    #allocation11 [shape = 'u8[4096]{0}', space=vmem, size = 0x1000, scoped, tag = 'output window, operand 0, single buffered']
    %16 = vsyncpa [#allocation3], 0
    %17 = vsyncpa [#allocation6], 0
    %18 = vsyncpa [#allocation9], 0
    %19 = vsyncpa [#allocation4], 0
    // Predicated region
    $region2: #{tpu_custom_call.1} parent=1 // pred_check
      _
    $region3: #{tpu_custom_call.1} parent=1 // pred_check_branch
      %21 = sbr.rel (0) target = $region5
    $region4: #{tpu_custom_call.1} parent=1 // pred_region
      %s23 = ssub.s32 128, 128
      %24 = vsyncadd [#allocation3], %s23
      %s26 = sshll.u32 [#allocation2], 4
      %s27 = int_to_ptr.vmem [resolvable:$true] %s26
      %29 = dma.hbm_to_vmem [thread:$0]  %s0, 128, %s27, [#allocation3]
    $region5: #{tpu_custom_call.1} parent=1 // pred_fallthru
      _
    // Predicated region
    $region6: #{tpu_custom_call.1} parent=1 // pred_check
      _
    $region7: #{tpu_custom_call.1} parent=1 // pred_check_branch
      %31 = sbr.rel (0) target = $region9
    $region8: #{tpu_custom_call.1} parent=1 // pred_region
      %s33 = ssub.s32 128, 128
      %34 = vsyncadd [#allocation6], %s33
      %s36 = sshll.u32 [#allocation5], 4
      %s37 = int_to_ptr.vmem [resolvable:$true] %s36
      %39 = dma.hbm_to_vmem [thread:$0]  %s1, 128, %s37, [#allocation6]
    $region9: #{tpu_custom_call.1} parent=1 // pred_fallthru
      _
    // Predicated region
    $region10: #{tpu_custom_call.1} parent=1 // pred_check
      _
    $region11: #{tpu_custom_call.1} parent=1 // pred_check_branch
      %41 = sbr.rel (0) target = $region13
    $region12: #{tpu_custom_call.1} parent=1 // pred_region
      %s43 = ssub.s32 512, 512
      %44 = vsyncadd [#allocation6], %s43
      %s45 = sshll.u32 [#allocation7], 4
      %s46 = int_to_ptr.vmem [resolvable:$true] %s45
      %51 = dma.hbm_to_vmem [thread:$0]  %s2, 512, %s46, [#allocation6], 256, 256, 16
    $region13: #{tpu_custom_call.1} parent=1 // pred_fallthru
      _
    // Predicated region
    $region14: #{tpu_custom_call.1} parent=1 // pred_check
      _
    $region15: #{tpu_custom_call.1} parent=1 // pred_check_branch
      %53 = sbr.rel (0) target = $region17
    $region16: #{tpu_custom_call.1} parent=1 // pred_region
      _
    $region17: #{tpu_custom_call.1} parent=1 // pred_fallthru
      _
    // Predicated region
    $region18: #{tpu_custom_call.1} parent=1 // pred_check
      _
    $region19: #{tpu_custom_call.1} parent=1 // pred_check_branch
      %55 = sbr.rel (0) target = $region21
    $region20: #{tpu_custom_call.1} parent=1 // pred_region
      %s57 = ssub.s32 8192, 8192
      %58 = vsyncadd [#allocation9], %s57
      %s59 = sshll.u32 [#allocation8], 4
      %s60 = int_to_ptr.vmem [resolvable:$true] %s59
      %65 = dma.hbm_to_vmem [thread:$0]  %s4, 8192, %s60, [#allocation9], 256, 256, 16
    $region21: #{tpu_custom_call.1} parent=1 // pred_fallthru
      _
    // Predicated region
    $region22: #{tpu_custom_call.1} parent=1 // pred_check
      _
    $region23: #{tpu_custom_call.1} parent=1 // pred_check_branch
      %67 = sbr.rel (0) target = $region25
    $region24: #{tpu_custom_call.1} parent=1 // pred_region
      _
    $region25: #{tpu_custom_call.1} parent=1 // pred_fallthru
      _
    // Predicated region
    $region26: #{tpu_custom_call.1} parent=1 // pred_check
      _
    $region27: #{tpu_custom_call.1} parent=1 // pred_check_branch
      %69 = sbr.rel (0) target = $region29
    $region28: #{tpu_custom_call.1} parent=1 // pred_region
      %s71 = ssub.s32 2048, 2048
      %72 = vsyncadd [#allocation9], %s71
      %s73 = sshll.u32 [#allocation10], 4
      %s74 = int_to_ptr.vmem [resolvable:$true] %s73
      %79 = dma.hbm_to_vmem [thread:$0]  %s6, 2048, %s74, [#allocation9], 128, 128, 8
    $region29: #{tpu_custom_call.1} parent=1 // pred_fallthru
      _
    // Predicated region
    $region30: #{tpu_custom_call.1} parent=1 // pred_check
      _
    $region31: #{tpu_custom_call.1} parent=1 // pred_check_branch
      %81 = sbr.rel (0) target = $region33
    $region32: #{tpu_custom_call.1} parent=1 // pred_region
      _
    $region33: #{tpu_custom_call.1} parent=1 // pred_fallthru
      _
    // Predicated region
    $region34: #{tpu_custom_call.1} parent=1 // pred_check
      _
    $region35: #{tpu_custom_call.1} parent=1 // pred_check_branch
      %83 = sbr.rel (0) target = $region37
    $region36: #{tpu_custom_call.1} parent=1 // pred_region
      _
    $region37: #{tpu_custom_call.1} parent=1 // pred_fallthru
      _
    // Predicated region
    $region38: #{tpu_custom_call.1} parent=1 // pred_check
      _
    $region39: #{tpu_custom_call.1} parent=1 // pred_check_branch
      %85 = sbr.rel (0) target = $region41
    $region40: #{tpu_custom_call.1} parent=1 // pred_region
      _
    $region41: #{tpu_custom_call.1} parent=1 // pred_fallthru
      _
    // Predicated region
    $region42: #{tpu_custom_call.1} parent=1 // pred_check
      _
    $region43: #{tpu_custom_call.1} parent=1 // pred_check_branch
      %87 = sbr.rel (0) target = $region45
    $region44: #{tpu_custom_call.1} parent=1 // pred_region
      _
    $region45: #{tpu_custom_call.1} parent=1 // pred_fallthru
      _
    // Predicated region
    $region46: #{tpu_custom_call.1} parent=1 // pred_check
      _
    $region47: #{tpu_custom_call.1} parent=1 // pred_check_branch
      %89 = sbr.rel (0) target = $region49
    $region48: #{tpu_custom_call.1} parent=1 // pred_region
      %90 = dma.done [#allocation3], 128
    $region49: #{tpu_custom_call.1} parent=1 // pred_fallthru
      _
    // Predicated region
    $region50: #{tpu_custom_call.1} parent=1 // pred_check
      _
    $region51: #{tpu_custom_call.1} parent=1 // pred_check_branch
      %92 = sbr.rel (0) target = $region53
    $region52: #{tpu_custom_call.1} parent=1 // pred_region
      %93 = dma.done [#allocation6], 128
    $region53: #{tpu_custom_call.1} parent=1 // pred_fallthru
      _
    // Predicated region
    $region54: #{tpu_custom_call.1} parent=1 // pred_check
      _
    $region55: #{tpu_custom_call.1} parent=1 // pred_check_branch
      %95 = sbr.rel (0) target = $region57
    $region56: #{tpu_custom_call.1} parent=1 // pred_region
      %96 = dma.done [#allocation6], 512
    $region57: #{tpu_custom_call.1} parent=1 // pred_fallthru
      _
    // Predicated region
    $region58: #{tpu_custom_call.1} parent=1 // pred_check
      _
    $region59: #{tpu_custom_call.1} parent=1 // pred_check_branch
      %98 = sbr.rel (0) target = $region61
    $region60: #{tpu_custom_call.1} parent=1 // pred_region
      %99 = dma.done [#allocation9], 8192
    $region61: #{tpu_custom_call.1} parent=1 // pred_fallthru
      _
    // Predicated region
    $region62: #{tpu_custom_call.1} parent=1 // pred_check
      _
    $region63: #{tpu_custom_call.1} parent=1 // pred_check_branch
      %101 = sbr.rel (0) target = $region65
    $region64: #{tpu_custom_call.1} parent=1 // pred_region
      %102 = dma.done [#allocation9], 2048
    $region65: #{tpu_custom_call.1} parent=1 // pred_fallthru
      _
    %v103 = vld [vmem:[#allocation2] sm:$0xff]
    %v104 = vld [vmem:[#allocation7] sm:$0xff]
    %v105 = vld [vmem:[#allocation7 + $0x8] sm:$0xff]
    %v106 = vld [vmem:[#allocation7 + $0x10] sm:$0xff]
    %v107 = vld [vmem:[#allocation7 + $0x18] sm:$0xff]
    %v108 = vld [vmem:[%s3] sm:$0x3]
    %v110 = vlaneseq
    %v111 = vshrl.u32 %v110, 7
    %v112 = vsub.s32 0, %v111
    %v113 = vrot.slane %v108, %v112
    %v114 = vlaneseq
    %v115 = vshrl.u32 %v114, 7
    %v116 = vsub.s32 1, %v115
    %v117 = vrot.slane %v108, %v116
    %vm120 = vcmask 130048
    %v122 = vsel %vm120, %v103, 0
    %124 = vmatprep.subr.mxu0 %v105
    %125 = vmatpush1.msra.mxu0 %v104
    %126 = vmatprep.subr.mxu0 %v107
    %127 = vmatpush1.msra.mxu0 %v106
    %128 = vmatprep.subr.mxu0 0.0
    %129 = vmatpush1.msra.mxu0 0.0
    %130 = vmatprep.subr.mxu0 0.0
    %131 = vmatpush1.msra.mxu0 0.0
    %132 = vmatprep.subr.mxu0 0.0
    %133 = vmatpush1.msra.mxu0 0.0
    %134 = vmatprep.subr.mxu0 0.0
    %135 = vmatpush1.msra.mxu0 0.0
    %136 = vmatprep.subr.mxu0 0.0
    %137 = vmatpush1.msra.mxu0 0.0
    %138 = vmatprep.subr.mxu0 0.0
    %139 = vmatpush1.msra.mxu0 0.0
    %140 = vmatprep.subr.mxu0 0.0
    %141 = vmatpush1.msra.mxu0 0.0
    %142 = vmatprep.subr.mxu0 0.0
    %143 = vmatpush1.msra.mxu0 0.0
    %144 = vmatprep.subr.mxu0 0.0
    %145 = vmatpush1.msra.mxu0 0.0
    %146 = vmatprep.subr.mxu0 0.0
    %147 = vmatpush1.msra.mxu0 0.0
    %148 = vmatprep.subr.mxu0 0.0
    %149 = vmatpush1.msra.mxu0 0.0
    %150 = vmatprep.subr.mxu0 0.0
    %151 = vmatpush1.msra.mxu0 0.0
    %152 = vmatprep.subr.mxu0 0.0
    %153 = vmatpush1.msra.mxu0 0.0
    %154 = vmatprep.subr.mxu0 0.0
    %155 = vmatpush1.msra.mxu0 0.0
    %156 = vmatprep.subr.mxu0 0.0
    %157 = vmatpush1.msra.mxu0 0.0
    %158 = vmatprep.subr.mxu0 0.0
    %159 = vmatpush1.msra.mxu0 0.0
    %160 = vmatprep.subr.mxu0 0.0
    %161 = vmatpush1.msra.mxu0 0.0
    %162 = vmatprep.subr.mxu0 0.0
    %163 = vmatpush1.msra.mxu0 0.0
    %164 = vmatprep.subr.mxu0 0.0
    %165 = vmatpush1.msra.mxu0 0.0
    %166 = vmatprep.subr.mxu0 0.0
    %167 = vmatpush1.msra.mxu0 0.0
    %168 = vmatprep.subr.mxu0 0.0
    %169 = vmatpush1.msra.mxu0 0.0
    %170 = vmatprep.subr.mxu0 0.0
    %171 = vmatpush1.msra.mxu0 0.0
    %172 = vmatprep.subr.mxu0 0.0
    %173 = vmatpush1.msra.mxu0 0.0
    %174 = vmatprep.subr.mxu0 0.0
    %175 = vmatpush1.msra.mxu0 0.0
    %176 = vmatprep.subr.mxu0 0.0
    %177 = vmatpush1.msra.mxu0 0.0
    %178 = vmatprep.subr.mxu0 0.0
    %179 = vmatpush1.msra.mxu0 0.0
    %180 = vmatprep.subr.mxu0 0.0
    %181 = vmatpush1.msra.mxu0 0.0
    %182 = vmatprep.subr.mxu0 0.0
    %183 = vmatpush1.msra.mxu0 0.0
    %184 = vmatprep.subr.mxu0 0.0
    %185 = vmatpush1.msra.mxu0 0.0
    %186 = vmatprep.subr.mxu0 0.0
    %187 = vmatpush1.msra.mxu0 0.0
    %188 = vmatprep.mubr.f32.mxu0 0.0
    %189 = vmatmul.mubr.f32.gmra.mrb[0].mxu0 %v122
    %v190 = vpop.f32.mrb[0].mxu0
    %v191 = vadd.f32 %v113, %v190
    %v192 = vpop.f32.mrb[0].mxu0
    %v193 = vadd.f32 %v117, %v192
    %194 = vdwg.mxu0
    %v195 = vlaneseq
    %v196 = vand.u32 %v195, 127
    %v197 = vadd.s32 %v196, 128
    %vm198 = vcmp.lt.s32.totalorder %v196, 128
    %vm199 = vcmp.lt.s32.totalorder %v197, 128
    %v200 = vtanh.pop %v191
    %v201 = vtanh.pop %v193
    %v202 = vmax.f32 %v191, 0.0
    %v203 = vmax.f32 %v193, 0.0
    %v204 = vsel %vm198, %v200, %v202
    %v205 = vsel %vm199, %v201, %v203
    %v206 = vld [vmem:[#allocation8] sm:$0xff]
    %v207 = vld [vmem:[#allocation8 + $0x8] sm:$0xff]
    %v208 = vld [vmem:[#allocation8 + $0x10] sm:$0xff]
    %v209 = vld [vmem:[#allocation8 + $0x18] sm:$0xff]
    %v210 = vld [vmem:[#allocation8 + $0x20] sm:$0xff]
    %v211 = vld [vmem:[#allocation8 + $0x28] sm:$0xff]
    %v212 = vld [vmem:[#allocation8 + $0x30] sm:$0xff]
    %v213 = vld [vmem:[#allocation8 + $0x38] sm:$0xff]
    %v214 = vld [vmem:[#allocation8 + $0x40] sm:$0xff]
    %v215 = vld [vmem:[#allocation8 + $0x48] sm:$0xff]
    %v216 = vld [vmem:[#allocation8 + $0x50] sm:$0xff]
    %v217 = vld [vmem:[#allocation8 + $0x58] sm:$0xff]
    %v218 = vld [vmem:[#allocation8 + $0x60] sm:$0xff]
    %v219 = vld [vmem:[#allocation8 + $0x68] sm:$0xff]
    %v220 = vld [vmem:[#allocation8 + $0x70] sm:$0xff]
    %v221 = vld [vmem:[#allocation8 + $0x78] sm:$0xff]
    %v222 = vld [vmem:[#allocation8 + $0x80] sm:$0xff]
    %v223 = vld [vmem:[#allocation8 + $0x88] sm:$0xff]
    %v224 = vld [vmem:[#allocation8 + $0x90] sm:$0xff]
    %v225 = vld [vmem:[#allocation8 + $0x98] sm:$0xff]
    %v226 = vld [vmem:[#allocation8 + $0xa0] sm:$0xff]
    %v227 = vld [vmem:[#allocation8 + $0xa8] sm:$0xff]
    %v228 = vld [vmem:[#allocation8 + $0xb0] sm:$0xff]
    %v229 = vld [vmem:[#allocation8 + $0xb8] sm:$0xff]
    %v230 = vld [vmem:[#allocation8 + $0xc0] sm:$0xff]
    %v231 = vld [vmem:[#allocation8 + $0xc8] sm:$0xff]
    %v232 = vld [vmem:[#allocation8 + $0xd0] sm:$0xff]
    %v233 = vld [vmem:[#allocation8 + $0xd8] sm:$0xff]
    %v234 = vld [vmem:[#allocation8 + $0xe0] sm:$0xff]
    %v235 = vld [vmem:[#allocation8 + $0xe8] sm:$0xff]
    %v236 = vld [vmem:[#allocation8 + $0xf0] sm:$0xff]
    %v237 = vld [vmem:[#allocation8 + $0xf8] sm:$0xff]
    %v238 = vld [vmem:[#allocation8 + $0x100] sm:$0xff]
    %v239 = vld [vmem:[#allocation8 + $0x108] sm:$0xff]
    %v240 = vld [vmem:[#allocation8 + $0x110] sm:$0xff]
    %v241 = vld [vmem:[#allocation8 + $0x118] sm:$0xff]
    %v242 = vld [vmem:[#allocation8 + $0x120] sm:$0xff]
    %v243 = vld [vmem:[#allocation8 + $0x128] sm:$0xff]
    %v244 = vld [vmem:[#allocation8 + $0x130] sm:$0xff]
    %v245 = vld [vmem:[#allocation8 + $0x138] sm:$0xff]
    %v246 = vld [vmem:[#allocation8 + $0x140] sm:$0xff]
    %v247 = vld [vmem:[#allocation8 + $0x148] sm:$0xff]
    %v248 = vld [vmem:[#allocation8 + $0x150] sm:$0xff]
    %v249 = vld [vmem:[#allocation8 + $0x158] sm:$0xff]
    %v250 = vld [vmem:[#allocation8 + $0x160] sm:$0xff]
    %v251 = vld [vmem:[#allocation8 + $0x168] sm:$0xff]
    %v252 = vld [vmem:[#allocation8 + $0x170] sm:$0xff]
    %v253 = vld [vmem:[#allocation8 + $0x178] sm:$0xff]
    %v254 = vld [vmem:[#allocation8 + $0x180] sm:$0xff]
    %v255 = vld [vmem:[#allocation8 + $0x188] sm:$0xff]
    %v256 = vld [vmem:[#allocation8 + $0x190] sm:$0xff]
    %v257 = vld [vmem:[#allocation8 + $0x198] sm:$0xff]
    %v258 = vld [vmem:[#allocation8 + $0x1a0] sm:$0xff]
    %v259 = vld [vmem:[#allocation8 + $0x1a8] sm:$0xff]
    %v260 = vld [vmem:[#allocation8 + $0x1b0] sm:$0xff]
    %v261 = vld [vmem:[#allocation8 + $0x1b8] sm:$0xff]
    %v262 = vld [vmem:[#allocation8 + $0x1c0] sm:$0xff]
    %v263 = vld [vmem:[#allocation8 + $0x1c8] sm:$0xff]
    %v264 = vld [vmem:[#allocation8 + $0x1d0] sm:$0xff]
    %v265 = vld [vmem:[#allocation8 + $0x1d8] sm:$0xff]
    %v266 = vld [vmem:[#allocation8 + $0x1e0] sm:$0xff]
    %v267 = vld [vmem:[#allocation8 + $0x1e8] sm:$0xff]
    %v268 = vld [vmem:[#allocation8 + $0x1f0] sm:$0xff]
    %v269 = vld [vmem:[#allocation8 + $0x1f8] sm:$0xff]
    %v270 = vld [vmem:[%s5] sm:$0x3]
    %v272 = vlaneseq
    %v273 = vshrl.u32 %v272, 7
    %v274 = vsub.s32 0, %v273
    %v275 = vrot.slane %v270, %v274
    %v276 = vlaneseq
    %v277 = vshrl.u32 %v276, 7
    %v278 = vsub.s32 1, %v277
    %v279 = vrot.slane %v270, %v278
    %282 = vmatprep.subr.mxu0 %v207
    %283 = vmatpush1.msra.mxu0 %v206
    %284 = vmatprep.subr.mxu0 %v209
    %285 = vmatpush1.msra.mxu0 %v208
    %286 = vmatprep.subr.mxu0 %v211
    %287 = vmatpush1.msra.mxu0 %v210
    %288 = vmatprep.subr.mxu0 %v213
    %289 = vmatpush1.msra.mxu0 %v212
    %290 = vmatprep.subr.mxu0 %v215
    %291 = vmatpush1.msra.mxu0 %v214
    %292 = vmatprep.subr.mxu0 %v217
    %293 = vmatpush1.msra.mxu0 %v216
    %294 = vmatprep.subr.mxu0 %v219
    %295 = vmatpush1.msra.mxu0 %v218
    %296 = vmatprep.subr.mxu0 %v221
    %297 = vmatpush1.msra.mxu0 %v220
    %298 = vmatprep.subr.mxu0 %v223
    %299 = vmatpush1.msra.mxu0 %v222
    %300 = vmatprep.subr.mxu0 %v225
    %301 = vmatpush1.msra.mxu0 %v224
    %302 = vmatprep.subr.mxu0 %v227
    %303 = vmatpush1.msra.mxu0 %v226
    %304 = vmatprep.subr.mxu0 %v229
    %305 = vmatpush1.msra.mxu0 %v228
    %306 = vmatprep.subr.mxu0 %v231
    %307 = vmatpush1.msra.mxu0 %v230
    %308 = vmatprep.subr.mxu0 %v233
    %309 = vmatpush1.msra.mxu0 %v232
    %310 = vmatprep.subr.mxu0 %v235
    %311 = vmatpush1.msra.mxu0 %v234
    %312 = vmatprep.subr.mxu0 %v237
    %313 = vmatpush1.msra.mxu0 %v236
    %314 = vmatprep.subr.mxu0 %v239
    %315 = vmatpush1.msra.mxu0 %v238
    %316 = vmatprep.subr.mxu0 %v241
    %317 = vmatpush1.msra.mxu0 %v240
    %318 = vmatprep.subr.mxu0 %v243
    %319 = vmatpush1.msra.mxu0 %v242
    %320 = vmatprep.subr.mxu0 %v245
    %321 = vmatpush1.msra.mxu0 %v244
    %322 = vmatprep.subr.mxu0 %v247
    %323 = vmatpush1.msra.mxu0 %v246
    %324 = vmatprep.subr.mxu0 %v249
    %325 = vmatpush1.msra.mxu0 %v248
    %326 = vmatprep.subr.mxu0 %v251
    %327 = vmatpush1.msra.mxu0 %v250
    %328 = vmatprep.subr.mxu0 %v253
    %329 = vmatpush1.msra.mxu0 %v252
    %330 = vmatprep.subr.mxu0 %v255
    %331 = vmatpush1.msra.mxu0 %v254
    %332 = vmatprep.subr.mxu0 %v257
    %333 = vmatpush1.msra.mxu0 %v256
    %334 = vmatprep.subr.mxu0 %v259
    %335 = vmatpush1.msra.mxu0 %v258
    %336 = vmatprep.subr.mxu0 %v261
    %337 = vmatpush1.msra.mxu0 %v260
    %338 = vmatprep.subr.mxu0 %v263
    %339 = vmatpush1.msra.mxu0 %v262
    %340 = vmatprep.subr.mxu0 %v265
    %341 = vmatpush1.msra.mxu0 %v264
    %342 = vmatprep.subr.mxu0 %v267
    %343 = vmatpush1.msra.mxu0 %v266
    %344 = vmatprep.subr.mxu0 %v269
    %345 = vmatpush1.msra.mxu0 %v268
    %346 = vmatprep.mubr.f32.mxu0 %v205
    %347 = vmatmul.mubr.f32.gmra.mrb[0].mxu0 %v204
    %v348 = vpop.f32.mrb[0].mxu0
    %v349 = vadd.f32 %v275, %v348
    %v350 = vpop.f32.mrb[0].mxu0
    %v351 = vadd.f32 %v279, %v350
    %352 = vdwg.mxu0
    %v353 = vtanh.pop %v349
    %v354 = vtanh.pop %v351
    %v355 = vmax.f32 %v349, 0.0
    %v356 = vmax.f32 %v351, 0.0
    %v357 = vsel %vm198, %v353, %v355
    %v358 = vsel %vm199, %v354, %v356
    %v359 = vld [vmem:[#allocation10] sm:$0xff]
    %v360 = vld [vmem:[#allocation10 + $0x8] sm:$0xff]
    %v361 = vld [vmem:[#allocation10 + $0x10] sm:$0xff]
    %v362 = vld [vmem:[#allocation10 + $0x18] sm:$0xff]
    %v363 = vld [vmem:[#allocation10 + $0x20] sm:$0xff]
    %v364 = vld [vmem:[#allocation10 + $0x28] sm:$0xff]
    %v365 = vld [vmem:[#allocation10 + $0x30] sm:$0xff]
    %v366 = vld [vmem:[#allocation10 + $0x38] sm:$0xff]
    %v367 = vld [vmem:[#allocation10 + $0x40] sm:$0xff]
    %v368 = vld [vmem:[#allocation10 + $0x48] sm:$0xff]
    %v369 = vld [vmem:[#allocation10 + $0x50] sm:$0xff]
    %v370 = vld [vmem:[#allocation10 + $0x58] sm:$0xff]
    %v371 = vld [vmem:[#allocation10 + $0x60] sm:$0xff]
    %v372 = vld [vmem:[#allocation10 + $0x68] sm:$0xff]
    %v373 = vld [vmem:[#allocation10 + $0x70] sm:$0xff]
    %v374 = vld [vmem:[#allocation10 + $0x78] sm:$0xff]
    %v375 = vld [vmem:[%s7] sm:$0x1]
    %v377 = vlaneseq
    %v378 = vshrl.u32 %v377, 7
    %v379 = vsub.s32 0, %v378
    %v380 = vrot.slane %v375, %v379
    %382 = vmatprep.subr.mxu0 0.0
    %383 = vmatpush1.msra.mxu0 %v359
    %384 = vmatprep.subr.mxu0 0.0
    %385 = vmatpush1.msra.mxu0 %v360
    %386 = vmatprep.subr.mxu0 0.0
    %387 = vmatpush1.msra.mxu0 %v361
    %388 = vmatprep.subr.mxu0 0.0
    %389 = vmatpush1.msra.mxu0 %v362
    %390 = vmatprep.subr.mxu0 0.0
    %391 = vmatpush1.msra.mxu0 %v363
    %392 = vmatprep.subr.mxu0 0.0
    %393 = vmatpush1.msra.mxu0 %v364
    %394 = vmatprep.subr.mxu0 0.0
    %395 = vmatpush1.msra.mxu0 %v365
    %396 = vmatprep.subr.mxu0 0.0
    %397 = vmatpush1.msra.mxu0 %v366
    %398 = vmatprep.subr.mxu0 0.0
    %399 = vmatpush1.msra.mxu0 %v367
    %400 = vmatprep.subr.mxu0 0.0
    %401 = vmatpush1.msra.mxu0 %v368
    %402 = vmatprep.subr.mxu0 0.0
    %403 = vmatpush1.msra.mxu0 %v369
    %404 = vmatprep.subr.mxu0 0.0
    %405 = vmatpush1.msra.mxu0 %v370
    %406 = vmatprep.subr.mxu0 0.0
    %407 = vmatpush1.msra.mxu0 %v371
    %408 = vmatprep.subr.mxu0 0.0
    %409 = vmatpush1.msra.mxu0 %v372
    %410 = vmatprep.subr.mxu0 0.0
    %411 = vmatpush1.msra.mxu0 %v373
    %412 = vmatprep.subr.mxu0 0.0
    %413 = vmatpush1.msra.mxu0 %v374
    %414 = vmatprep.subr.mxu0 0.0
    %415 = vmatpush1.msra.mxu0 0.0
    %416 = vmatprep.subr.mxu0 0.0
    %417 = vmatpush1.msra.mxu0 0.0
    %418 = vmatprep.subr.mxu0 0.0
    %419 = vmatpush1.msra.mxu0 0.0
    %420 = vmatprep.subr.mxu0 0.0
    %421 = vmatpush1.msra.mxu0 0.0
    %422 = vmatprep.subr.mxu0 0.0
    %423 = vmatpush1.msra.mxu0 0.0
    %424 = vmatprep.subr.mxu0 0.0
    %425 = vmatpush1.msra.mxu0 0.0
    %426 = vmatprep.subr.mxu0 0.0
    %427 = vmatpush1.msra.mxu0 0.0
    %428 = vmatprep.subr.mxu0 0.0
    %429 = vmatpush1.msra.mxu0 0.0
    %430 = vmatprep.subr.mxu0 0.0
    %431 = vmatpush1.msra.mxu0 0.0
    %432 = vmatprep.subr.mxu0 0.0
    %433 = vmatpush1.msra.mxu0 0.0
    %434 = vmatprep.subr.mxu0 0.0
    %435 = vmatpush1.msra.mxu0 0.0
    %436 = vmatprep.subr.mxu0 0.0
    %437 = vmatpush1.msra.mxu0 0.0
    %438 = vmatprep.subr.mxu0 0.0
    %439 = vmatpush1.msra.mxu0 0.0
    %440 = vmatprep.subr.mxu0 0.0
    %441 = vmatpush1.msra.mxu0 0.0
    %442 = vmatprep.subr.mxu0 0.0
    %443 = vmatpush1.msra.mxu0 0.0
    %444 = vmatprep.subr.mxu0 0.0
    %445 = vmatpush1.msra.mxu0 0.0
    %446 = vmatprep.mubr.f32.mxu0 0.0
    %447 = vmatmul.mubr.f32.gmra.mrb[0].mxu0 %v357
    %v448 = vpop.f32.mrb[0].mxu0
    %v449 = vadd.f32 %v380, %v448
    %v450 = vpop.f32.mrb[0].mxu0
    %451 = vdwg.mxu0
    %v452 = vtanh.pop %v449
    %v453 = vld [vmem:[%s8] sm:$0x1]
    %v455 = vlaneseq
    %v456 = vshrl.u32 %v455, 7
    %v457 = vsub.s32 0, %v456
    %v458 = vrot.slane %v453, %v457
    %v460 = vmul.f32 %v358, %v458
    %461 = vadd.xlane.f32.xlu0 %v460
    %v462 = vpop.xlane.xlu0 %461
    %v463 = vld [vmem:[#allocation5] sm:$0xff]
    %v464 = vsub.f32 %v463, %v452
    %v465 = vmul.f32 %v464, %v464
    %v466 = vld [vmem:[%s9] sm:$0x1]
    %v468 = vlaneseq
    %v469 = vshrl.u32 %v468, 7
    %v470 = vsub.s32 0, %v469
    %v471 = vrot.slane %v466, %v470
    %v473 = vmul.f32 %v465, %v471
    %vm474 = vcmask 64512
    %v475 = vsel %vm474, %v473, 0.0
    %476 = vadd.xlane.f32.xlu0 %v475
    %v477 = vpop.xlane.xlu0 %476
    %vm478 = vcmp.eq.s32.totalorder %v196, 8
    %v479 = vsel %vm478, %v462, 0.0
    %v480 = vadd.f32 %v452, %v479
    %vm481 = vcmp.eq.s32.totalorder %v196, 9
    %v482 = vmul.f32 %v477, -0.5
    %v483 = vsel %vm481, %v482, 0.0
    %v484 = vadd.f32 %v480, %v483
    %v485 = vld [vmem:[%s10] sm:$0x1]
    %v487 = vlaneseq
    %v488 = vshrl.u32 %v487, 7
    %v489 = vsub.s32 0, %v488
    %v490 = vrot.slane %v485, %v489
    %v492 = vadd.f32 %v484, %v490
    %493 = vst [vmem:[#allocation11] sm:$0xff] %v492
    // Predicated region
    $region66: #{tpu_custom_call.1} parent=1 // pred_check
      _
    $region67: #{tpu_custom_call.1} parent=1 // pred_check_branch
      %495 = sbr.rel (0) target = $region69
    $region68: #{tpu_custom_call.1} parent=1 // pred_region
      %s497 = ssub.s32 128, 128
      %498 = vsyncadd [#allocation4], %s497
      %s500 = sshll.u32 [#allocation11], 4
      %s501 = int_to_ptr.vmem [resolvable:$true] %s500
      %503 = dma.vmem_to_hbm [thread:$0]  %s501, 128, %s11, [#allocation4]
    $region69: #{tpu_custom_call.1} parent=1 // pred_fallthru
      _
    // Predicated region
    $region70: #{tpu_custom_call.1} parent=1 // pred_check
      _
    $region71: #{tpu_custom_call.1} parent=1 // pred_check_branch
      %505 = sbr.rel (0) target = $region73
    $region72: #{tpu_custom_call.1} parent=1 // pred_region
      %506 = dma.done [#allocation4], 128
    $region73: #{tpu_custom_call.1} parent=1 // pred_fallthru
      _
    %507 = vsyncpa [#allocation3], 1
    %508 = vsyncpa [#allocation6], 1
    %509 = vsyncpa [#allocation9], 1
    %510 = vsyncpa [#allocation4], 1

</llo_original>
